<compile_context>
chip_gen: v6e
topology: v6e:2x2x1
jax: 0.10.0
libtpu: 0.0.40
codegen_flags: <defaults>
</compile_context>

<pallas_src>
import jax
import jax.numpy as jnp
from jax.experimental import pallas as pl
from jax.experimental.pallas import tpu as pltpu

EPS = 1e-9               # matches nn.LayerNorm(..., eps=1e-09)
MAX_TILE = 512           # max token rows per grid step
ONE_HOT_MAX_VOCAB = 4096 # beyond this the table should live in HBM (see TODO)


def _pick_tile(batch, seq, max_tile):
    """Largest multiple-of-8 tile ts <= max_tile such that ts | (batch*seq) and
    ts either divides seq (contiguous positions) or is a multiple of seq
    (tile spans whole sequences)."""
    n = batch * seq
    best = None
    for ts in range(8, min(n, max_tile) + 1, 8):
        if n % ts:
            continue
        if seq % ts == 0 or ts % seq == 0:
            best = ts
    if best is None:
        raise ValueError(
            "no valid tile: batch*seq needs a multiple-of-8 divisor that divides "
            "the sequence length or is a multiple of it")
    return best


def _make_kernel(ts, d, vocab, has_seg, tiles_per_seq, pos_is_tile):
    inv_d = 1.0 / d

    def kernel(*refs):
        if has_seg:
            idx_ref, wtab_ref, ptab_ref, ttab_ref, gb_ref, out_ref = refs
        else:
            idx_ref, wtab_ref, ptab_ref, gb_ref, out_ref = refs

        # ---- word-embedding gather as a one-hot MXU matmul --------------------
        ids = idx_ref[:, 0:1]                                        # (ts, 1) i32
        cols = jax.lax.broadcasted_iota(jnp.int32, (ts, vocab), 1)   # (ts, V)
        onehot = (cols == ids).astype(wtab_ref.dtype)                # exact 0/1
        x = jnp.dot(onehot, wtab_ref[...], preferred_element_type=jnp.float32)

        # ---- positions: constant resident block ------------------------------
        if pos_is_tile:
            pos = ptab_ref[...]                                      # (ts, D)
        else:
            off = (pl.program_id(0) % tiles_per_seq) * ts
            off = pl.multiple_of(off, 8)
            pos = ptab_ref[pl.ds(off, ts), :]
        x = x + pos.astype(jnp.float32)

        # ---- token-type embedding: 2-row arithmetic select --------------------
        if has_seg:
            seg = idx_ref[:, 1:2].astype(jnp.float32)                # (ts, 1)
            t0 = ttab_ref[0:1, :].astype(jnp.float32)
            t1 = ttab_ref[1:2, :].astype(jnp.float32)
            x = x + t0 + seg * (t1 - t0)

        # ---- LayerNorm (two-pass stats, biased variance like PyTorch) ---------
        mean = jnp.sum(x, axis=-1, keepdims=True) * inv_d
        xc = x - mean
        var = jnp.sum(xc * xc, axis=-1, keepdims=True) * inv_d       # >= 0
        inv = jax.lax.rsqrt(var + EPS)
        gamma = gb_ref[0:1, :].astype(jnp.float32)
        beta = gb_ref[1:2, :].astype(jnp.float32)
        out_ref[...] = (xc * inv * gamma + beta).astype(out_ref.dtype)

    return kernel


def transformer_embedding(input_ids, seg, word_emb, pos_emb, tok_type_emb,
                          gamma, beta, *, max_tile=MAX_TILE):
    B, S = input_ids.shape
    V, D = word_emb.shape
    if V > ONE_HOT_MAX_VOCAB:
        # TODO(synk): HBM-resident table + pipelined per-row DMA gather for large vocab.
        raise NotImplementedError("large-vocab HBM gather path not implemented")

    N = B * S
    ts = _pick_tile(B, S, max_tile)
    num_tiles = N // ts
    has_seg = seg is not None
    out_dtype = word_emb.dtype

    # Pack token ids (+ segment ids) into one small int32 block per tile.
    ids = input_ids.reshape(N, 1).astype(jnp.int32)
    if has_seg:
        idx = jnp.concatenate([ids, seg.reshape(N, 1).astype(jnp.int32)], axis=1)
    else:
        idx = ids
    n_idx_cols = idx.shape[1]

    # Positional block, resident once across the whole grid.
    if ts > S:                                   # tile spans ts // S whole sequences
        pos_block = jnp.tile(pos_emb[:S], (ts // S, 1))              # (ts, D)
        pos_is_tile = True
        tiles_per_seq = 1
    else:
        pos_block = pos_emb[:S]                                      # (S, D)
        pos_is_tile = (ts == S)
        tiles_per_seq = S // ts

    gb = jnp.stack([gamma, beta])                                    # (2, D)

    inputs = [idx, word_emb, pos_block]
    if has_seg:
        inputs.append(tok_type_emb)
    inputs.append(gb)

    def make_specs(single_buffer_consts):
        const_kwargs = {}
        if single_buffer_consts:
            const_kwargs = dict(pipeline_mode=pl.Buffered(1))
        in_specs = [
            pl.BlockSpec((ts, n_idx_cols), lambda i: (i, 0)),
            pl.BlockSpec(word_emb.shape, lambda i: (0, 0), **const_kwargs),
            pl.BlockSpec(pos_block.shape, lambda i: (0, 0), **const_kwargs),
        ]
        if has_seg:
            in_specs.append(
                pl.BlockSpec(tok_type_emb.shape, lambda i: (0, 0), **const_kwargs))
        in_specs.append(pl.BlockSpec(gb.shape, lambda i: (0, 0), **const_kwargs))
        out_specs = pl.BlockSpec((ts, D), lambda i: (i, 0))
        return in_specs, out_specs

    # ---- generation-aware VMEM budget --------------------------------------
    def nbytes(a):
        return int(a.size) * a.dtype.itemsize

    tile_bytes = ts * D * jnp.dtype(out_dtype).itemsize
    est = (2 * nbytes(word_emb) + 2 * nbytes(pos_block)
           + (2 * nbytes(tok_type_emb) if has_seg else 0) + 2 * nbytes(gb)
           + 2 * ts * n_idx_cols * 4
           + 2 * tile_bytes                       # double-buffered output tile
           + ts * max(V, D) * 4)                  # one-hot / f32 intermediates
    try:
        cap = int(pltpu.get_tpu_info().vmem_capacity_bytes)
    except Exception:
        cap = 64 << 20                            # conservative (v7x per-TC VMEM)
    vmem_limit = int(min(max(est + (4 << 20), 16 << 20), cap - (8 << 20)))

    kernel = _make_kernel(ts, D, V, has_seg, tiles_per_seq, pos_is_tile)
    out_shape = jax.ShapeDtypeStruct((N, D), out_dtype)

    def run(in_specs, out_specs):
        out = pl.pallas_call(
            kernel,
            out_shape=out_shape,
            grid_spec=pltpu.PrefetchScalarGridSpec(
                num_scalar_prefetch=0,
                grid=(num_tiles,),
                in_specs=in_specs,
                out_specs=out_specs),
            compiler_params=pltpu.CompilerParams(
                dimension_semantics=("parallel",),
                vmem_limit_bytes=vmem_limit),
        )(*inputs)
        return jax.block_until_ready(out)

    try:
        out = run(*make_specs(True))
    except Exception:
        # pipeline_mode=pl.Buffered(1) not supported by this build: fall back to
        # default double-buffered constant blocks.
        out = run(*make_specs(False))

    return out.reshape(B, S, D)


def reference(input_ids, seg, word_emb, pos_emb, tok_type_emb, gamma, beta):
    S = input_ids.shape[1]
    x = word_emb[input_ids] + pos_emb[jnp.arange(S)][None, :, :]
    if seg is not None:
        x = x + tok_type_emb[seg]
    mean = x.mean(-1, keepdims=True)
    var = ((x - mean) ** 2).mean(-1, keepdims=True)
    return (x - mean) / jnp.sqrt(var + EPS) * gamma + beta


if __name__ == "__main__":
    key = jax.random.PRNGKey(0)
    k1, k2, k3, k4, k5, k6, k7 = jax.random.split(key, 7)

    # ---- Config 1: short sequences -> one tile spans whole sequences --------
    vocab_size, n_position, d_model = 64, 16, 128
    B, S = 2, 8
    word_emb = jax.random.normal(k1, (vocab_size, d_model), jnp.float32)
    pos_emb = jax.random.normal(k2, (n_position, d_model), jnp.float32)
    tok_type_emb = jax.random.normal(k3, (2, d_model), jnp.float32)
    gamma = 1.0 + 0.1 * jax.random.normal(k4, (d_model,), jnp.float32)
    beta = 0.1 * jax.random.normal(k5, (d_model,), jnp.float32)
    input_ids = jax.random.randint(k6, (B, S), 0, vocab_size, jnp.int32)
    seg = jax.random.randint(k7, (B, S), 0, 2, jnp.int32)

    out = transformer_embedding(input_ids, seg, word_emb, pos_emb,
                                tok_type_emb, gamma, beta)
    out = jax.block_until_ready(out)
    ref = reference(input_ids, seg, word_emb, pos_emb, tok_type_emb, gamma, beta)
    assert out.shape == (B, S, d_model)
    assert jnp.allclose(out, ref, atol=3e-5, rtol=3e-5), "mismatch (seg, multi-seq tile)"

    # seg=None path (token-type add skipped entirely).
    out_ns = transformer_embedding(input_ids, None, word_emb, pos_emb,
                                   tok_type_emb, gamma, beta)
    out_ns = jax.block_until_ready(out_ns)
    ref_ns = reference(input_ids, None, word_emb, pos_emb, tok_type_emb, gamma, beta)
    assert jnp.allclose(out_ns, ref_ns, atol=3e-5, rtol=3e-5), "mismatch (no seg)"

    # ---- Config 2: sequence longer than the tile -> sliced-position path ----
    B2, S2, n_pos2 = 2, 64, 64
    pos_emb2 = jax.random.normal(k2, (n_pos2, d_model), jnp.float32)
    input_ids2 = jax.random.randint(k6, (B2, S2), 0, vocab_size, jnp.int32)
    seg2 = jax.random.randint(k7, (B2, S2), 0, 2, jnp.int32)
    out2 = transformer_embedding(input_ids2, seg2, word_emb, pos_emb2,
                                 tok_type_emb, gamma, beta, max_tile=32)
    out2 = jax.block_until_ready(out2)
    ref2 = reference(input_ids2, seg2, word_emb, pos_emb2, tok_type_emb, gamma, beta)
    assert jnp.allclose(out2, ref2, atol=3e-5, rtol=3e-5), "mismatch (seg, sliced pos)"

    print("KERNEL_OK")
</pallas_src>

<mosaic_0001>
module attributes {stable_mosaic.version = 11 : i64} {
  func.func @kernel(%arg0: i32, %arg1: memref<16x2xi32, #tpu.memory_space<vmem>>, %arg2: memref<64x128xf32, #tpu.memory_space<vmem>>, %arg3: memref<16x128xf32, #tpu.memory_space<vmem>>, %arg4: memref<2x128xf32, #tpu.memory_space<vmem>>, %arg5: memref<2x128xf32, #tpu.memory_space<vmem>>, %arg6: memref<16x128xf32, #tpu.memory_space<vmem>>) attributes {dimension_semantics = [#tpu.dimension_semantics<parallel>], iteration_bounds = array<i64: 1>, scalar_prefetch = 0 : i64, scratch_operands = 0 : i64, tpu.core_type = #tpu.core_type<tc>, window_params = [{transform_indices = @transform_0, window_bounds = array<i64: 16, 2>}, {pipeline_mode = #tpu.pipeline_mode<synchronous>, transform_indices = @transform_1, window_bounds = array<i64: 64, 128>}, {pipeline_mode = #tpu.pipeline_mode<synchronous>, transform_indices = @transform_2, window_bounds = array<i64: 16, 128>}, {pipeline_mode = #tpu.pipeline_mode<synchronous>, transform_indices = @transform_3, window_bounds = array<i64: 2, 128>}, {pipeline_mode = #tpu.pipeline_mode<synchronous>, transform_indices = @transform_4, window_bounds = array<i64: 2, 128>}, {transform_indices = @transform_5, window_bounds = array<i64: 16, 128>}]} {
    %c0 = arith.constant 0 : index
    %c0_0 = arith.constant 0 : index
    %0 = vector.load %arg1[%c0, %c0_0] : memref<16x2xi32, #tpu.memory_space<vmem>>, vector<16x1xi32>
    %1 = tpu.iota {dimensions = array<i32: 1>} : vector<16x64xi32>
    %2 = vector.broadcast %0 : vector<16x1xi32> to vector<16x64xi32>
    %3 = arith.cmpi eq, %1, %2 : vector<16x64xi32>
    %4 = arith.extui %3 : vector<16x64xi1> to vector<16x64xi32>
    %5 = arith.sitofp %4 : vector<16x64xi32> to vector<16x64xf32>
    %c0_1 = arith.constant 0 : index
    %c0_2 = arith.constant 0 : index
    %6 = vector.load %arg2[%c0_1, %c0_2] : memref<64x128xf32, #tpu.memory_space<vmem>>, vector<64x128xf32>
    %cst = arith.constant dense<0.000000e+00> : vector<16x128xf32>
    %7 = tpu.matmul %5, %6, %cst {dimension_numbers = #tpu.dot_dimension_numbers<[1], [0], [0], [1], [0, 0, 1, 1], [], []>} : vector<16x64xf32>, vector<64x128xf32>, vector<16x128xf32> -> vector<16x128xf32>
    %c0_3 = arith.constant 0 : index
    %c0_4 = arith.constant 0 : index
    %8 = vector.load %arg3[%c0_3, %c0_4] : memref<16x128xf32, #tpu.memory_space<vmem>>, vector<16x128xf32>
    %9 = arith.addf %7, %8 : vector<16x128xf32>
    %c0_5 = arith.constant 0 : index
    %c1 = arith.constant 1 : index
    %10 = vector.load %arg1[%c0_5, %c1] : memref<16x2xi32, #tpu.memory_space<vmem>>, vector<16x1xi32>
    %11 = arith.sitofp %10 : vector<16x1xi32> to vector<16x1xf32>
    %c0_6 = arith.constant 0 : index
    %c0_7 = arith.constant 0 : index
    %12 = vector.load %arg4[%c0_6, %c0_7] : memref<2x128xf32, #tpu.memory_space<vmem>>, vector<1x128xf32>
    %c1_8 = arith.constant 1 : index
    %c0_9 = arith.constant 0 : index
    %13 = vector.load %arg4[%c1_8, %c0_9] : memref<2x128xf32, #tpu.memory_space<vmem>>, vector<1x128xf32>
    %14 = vector.broadcast %12 : vector<1x128xf32> to vector<16x128xf32>
    %15 = arith.addf %9, %14 : vector<16x128xf32>
    %16 = arith.subf %13, %12 : vector<1x128xf32>
    %17 = vector.broadcast %11 : vector<16x1xf32> to vector<16x128xf32>
    %18 = vector.broadcast %16 : vector<1x128xf32> to vector<16x128xf32>
    %19 = arith.mulf %17, %18 : vector<16x128xf32>
    %20 = arith.addf %15, %19 : vector<16x128xf32>
    %cst_10 = arith.constant dense<0.000000e+00> : vector<16xf32>
    %21 = vector.multi_reduction <add>, %20, %cst_10 [1] : vector<16x128xf32> to vector<16xf32>
    %22 = vector.shape_cast %21 : vector<16xf32> to vector<16x1xf32>
    %cst_11 = arith.constant 7.812500e-03 : f32
    %23 = vector.broadcast %cst_11 : f32 to vector<16x1xf32>
    %24 = arith.mulf %22, %23 : vector<16x1xf32>
    %25 = vector.broadcast %24 : vector<16x1xf32> to vector<16x128xf32>
    %26 = arith.subf %20, %25 : vector<16x128xf32>
    %27 = arith.mulf %26, %26 : vector<16x128xf32>
    %cst_12 = arith.constant dense<0.000000e+00> : vector<16xf32>
    %28 = vector.multi_reduction <add>, %27, %cst_12 [1] : vector<16x128xf32> to vector<16xf32>
    %29 = vector.shape_cast %28 : vector<16xf32> to vector<16x1xf32>
    %cst_13 = arith.constant 7.812500e-03 : f32
    %30 = vector.broadcast %cst_13 : f32 to vector<16x1xf32>
    %31 = arith.mulf %29, %30 : vector<16x1xf32>
    %cst_14 = arith.constant 9.99999971E-10 : f32
    %32 = vector.broadcast %cst_14 : f32 to vector<16x1xf32>
    %33 = arith.addf %31, %32 : vector<16x1xf32>
    %34 = math.rsqrt %33 : vector<16x1xf32>
    %c0_15 = arith.constant 0 : index
    %c0_16 = arith.constant 0 : index
    %35 = vector.load %arg5[%c0_15, %c0_16] : memref<2x128xf32, #tpu.memory_space<vmem>>, vector<1x128xf32>
    %c1_17 = arith.constant 1 : index
    %c0_18 = arith.constant 0 : index
    %36 = vector.load %arg5[%c1_17, %c0_18] : memref<2x128xf32, #tpu.memory_space<vmem>>, vector<1x128xf32>
    %37 = vector.broadcast %34 : vector<16x1xf32> to vector<16x128xf32>
    %38 = arith.mulf %26, %37 : vector<16x128xf32>
    %39 = vector.broadcast %35 : vector<1x128xf32> to vector<16x128xf32>
    %40 = arith.mulf %38, %39 : vector<16x128xf32>
    %41 = vector.broadcast %36 : vector<1x128xf32> to vector<16x128xf32>
    %42 = arith.addf %40, %41 : vector<16x128xf32>
    %c0_19 = arith.constant 0 : index
    %c0_20 = arith.constant 0 : index
    %43 = vector.load %arg6[%c0_19, %c0_20] : memref<16x128xf32, #tpu.memory_space<vmem>>, vector<16x128xf32>
    tpu.vector_store %arg6[%c0_19, %c0_20], %42 {strides = array<i32>} : memref<16x128xf32, #tpu.memory_space<vmem>>, vector<16x128xf32>,
    return
  }
  func.func @transform_0(%arg0: i32) -> (i32, i32) {
    %c0_i32 = arith.constant 0 : i32
    %c0_i32_0 = arith.constant 0 : i32
    return %arg0, %c0_i32 : i32, i32
  }
  func.func @transform_1(%arg0: i32) -> (i32, i32) {
    %c0_i32 = arith.constant 0 : i32
    %c0_i32_0 = arith.constant 0 : i32
    %c0_i32_1 = arith.constant 0 : i32
    return %c0_i32, %c0_i32_0 : i32, i32
  }
  func.func @transform_2(%arg0: i32) -> (i32, i32) {
    %c0_i32 = arith.constant 0 : i32
    %c0_i32_0 = arith.constant 0 : i32
    %c0_i32_1 = arith.constant 0 : i32
    return %c0_i32, %c0_i32_0 : i32, i32
  }
  func.func @transform_3(%arg0: i32) -> (i32, i32) {
    %c0_i32 = arith.constant 0 : i32
    %c0_i32_0 = arith.constant 0 : i32
    %c0_i32_1 = arith.constant 0 : i32
    return %c0_i32, %c0_i32_0 : i32, i32
  }
  func.func @transform_4(%arg0: i32) -> (i32, i32) {
    %c0_i32 = arith.constant 0 : i32
    %c0_i32_0 = arith.constant 0 : i32
    %c0_i32_1 = arith.constant 0 : i32
    return %c0_i32, %c0_i32_0 : i32, i32
  }
  func.func @transform_5(%arg0: i32) -> (i32, i32) {
    %c0_i32 = arith.constant 0 : i32
    %c0_i32_0 = arith.constant 0 : i32
    return %arg0, %c0_i32 : i32, i32
  }
}

module attributes {stable_mosaic.version = 11 : i64} {
  func.func @kernel(%arg0: i32, %arg1: memref<16x2xi32, #tpu.memory_space<vmem>>, %arg2: memref<64x128xf32, #tpu.memory_space<vmem>>, %arg3: memref<16x128xf32, #tpu.memory_space<vmem>>, %arg4: memref<2x128xf32, #tpu.memory_space<vmem>>, %arg5: memref<2x128xf32, #tpu.memory_space<vmem>>, %arg6: memref<16x128xf32, #tpu.memory_space<vmem>>) attributes {dimension_semantics = [#tpu.dimension_semantics<parallel>], iteration_bounds = array<i64: 1>, scalar_prefetch = 0 : i64, scratch_operands = 0 : i64, tpu.core_type = #tpu.core_type<tc>, window_params = [{transform_indices = @transform_0, window_bounds = array<i64: 16, 2>}, {pipeline_mode = #tpu.pipeline_mode<synchronous>, transform_indices = @transform_1, window_bounds = array<i64: 64, 128>}, {pipeline_mode = #tpu.pipeline_mode<synchronous>, transform_indices = @transform_2, window_bounds = array<i64: 16, 128>}, {pipeline_mode = #tpu.pipeline_mode<synchronous>, transform_indices = @transform_3, window_bounds = array<i64: 2, 128>}, {pipeline_mode = #tpu.pipeline_mode<synchronous>, transform_indices = @transform_4, window_bounds = array<i64: 2, 128>}, {transform_indices = @transform_5, window_bounds = array<i64: 16, 128>}]} {
    %c0 = arith.constant 0 : index
    %c0_0 = arith.constant 0 : index
    %0 = vector.load %arg1[%c0, %c0_0] : memref<16x2xi32, #tpu.memory_space<vmem>>, vector<16x1xi32>
    %1 = tpu.iota {dimensions = array<i32: 1>} : vector<16x64xi32>
    %2 = vector.broadcast %0 : vector<16x1xi32> to vector<16x64xi32>
    %3 = arith.cmpi eq, %1, %2 : vector<16x64xi32>
    %4 = arith.extui %3 : vector<16x64xi1> to vector<16x64xi32>
    %5 = arith.sitofp %4 : vector<16x64xi32> to vector<16x64xf32>
    %c0_1 = arith.constant 0 : index
    %c0_2 = arith.constant 0 : index
    %6 = vector.load %arg2[%c0_1, %c0_2] : memref<64x128xf32, #tpu.memory_space<vmem>>, vector<64x128xf32>
    %cst = arith.constant dense<0.000000e+00> : vector<16x128xf32>
    %7 = tpu.matmul %5, %6, %cst {dimension_numbers = #tpu.dot_dimension_numbers<[1], [0], [0], [1], [0, 0, 1, 1], [], []>} : vector<16x64xf32>, vector<64x128xf32>, vector<16x128xf32> -> vector<16x128xf32>
    %c0_3 = arith.constant 0 : index
    %c0_4 = arith.constant 0 : index
    %8 = vector.load %arg3[%c0_3, %c0_4] : memref<16x128xf32, #tpu.memory_space<vmem>>, vector<16x128xf32>
    %9 = arith.addf %7, %8 : vector<16x128xf32>
    %c0_5 = arith.constant 0 : index
    %c1 = arith.constant 1 : index
    %10 = vector.load %arg1[%c0_5, %c1] : memref<16x2xi32, #tpu.memory_space<vmem>>, vector<16x1xi32>
    %11 = arith.sitofp %10 : vector<16x1xi32> to vector<16x1xf32>
    %c0_6 = arith.constant 0 : index
    %c0_7 = arith.constant 0 : index
    %12 = vector.load %arg4[%c0_6, %c0_7] : memref<2x128xf32, #tpu.memory_space<vmem>>, vector<1x128xf32>
    %c1_8 = arith.constant 1 : index
    %c0_9 = arith.constant 0 : index
    %13 = vector.load %arg4[%c1_8, %c0_9] : memref<2x128xf32, #tpu.memory_space<vmem>>, vector<1x128xf32>
    %14 = vector.broadcast %12 : vector<1x128xf32> to vector<16x128xf32>
    %15 = arith.addf %9, %14 : vector<16x128xf32>
    %16 = arith.subf %13, %12 : vector<1x128xf32>
    %17 = vector.broadcast %11 : vector<16x1xf32> to vector<16x128xf32>
    %18 = vector.broadcast %16 : vector<1x128xf32> to vector<16x128xf32>
    %19 = arith.mulf %17, %18 : vector<16x128xf32>
    %20 = arith.addf %15, %19 : vector<16x128xf32>
    %cst_10 = arith.constant dense<0.000000e+00> : vector<16xf32>
    %21 = vector.multi_reduction <add>, %20, %cst_10 [1] : vector<16x128xf32> to vector<16xf32>
    %22 = vector.shape_cast %21 : vector<16xf32> to vector<16x1xf32>
    %cst_11 = arith.constant 7.812500e-03 : f32
    %23 = vector.broadcast %cst_11 : f32 to vector<16x1xf32>
    %24 = arith.mulf %22, %23 : vector<16x1xf32>
    %25 = vector.broadcast %24 : vector<16x1xf32> to vector<16x128xf32>
    %26 = arith.subf %20, %25 : vector<16x128xf32>
    %27 = arith.mulf %26, %26 : vector<16x128xf32>
    %cst_12 = arith.constant dense<0.000000e+00> : vector<16xf32>
    %28 = vector.multi_reduction <add>, %27, %cst_12 [1] : vector<16x128xf32> to vector<16xf32>
    %29 = vector.shape_cast %28 : vector<16xf32> to vector<16x1xf32>
    %cst_13 = arith.constant 7.812500e-03 : f32
    %30 = vector.broadcast %cst_13 : f32 to vector<16x1xf32>
    %31 = arith.mulf %29, %30 : vector<16x1xf32>
    %cst_14 = arith.constant 9.99999971E-10 : f32
    %32 = vector.broadcast %cst_14 : f32 to vector<16x1xf32>
    %33 = arith.addf %31, %32 : vector<16x1xf32>
    %34 = math.rsqrt %33 : vector<16x1xf32>
    %c0_15 = arith.constant 0 : index
    %c0_16 = arith.constant 0 : index
    %35 = vector.load %arg5[%c0_15, %c0_16] : memref<2x128xf32, #tpu.memory_space<vmem>>, vector<1x128xf32>
    %c1_17 = arith.constant 1 : index
    %c0_18 = arith.constant 0 : index
    %36 = vector.load %arg5[%c1_17, %c0_18] : memref<2x128xf32, #tpu.memory_space<vmem>>, vector<1x128xf32>
    %37 = vector.broadcast %34 : vector<16x1xf32> to vector<16x128xf32>
    %38 = arith.mulf %26, %37 : vector<16x128xf32>
    %39 = vector.broadcast %35 : vector<1x128xf32> to vector<16x128xf32>
    %40 = arith.mulf %38, %39 : vector<16x128xf32>
    %41 = vector.broadcast %36 : vector<1x128xf32> to vector<16x128xf32>
    %42 = arith.addf %40, %41 : vector<16x128xf32>
    %c0_19 = arith.constant 0 : index
    %c0_20 = arith.constant 0 : index
    %43 = vector.load %arg6[%c0_19, %c0_20] : memref<16x128xf32, #tpu.memory_space<vmem>>, vector<16x128xf32>
    tpu.vector_store %arg6[%c0_19, %c0_20], %42 {strides = array<i32>} : memref<16x128xf32, #tpu.memory_space<vmem>>, vector<16x128xf32>,
    return
  }
  func.func @transform_0(%arg0: i32) -> (i32, i32) {
    %c0_i32 = arith.constant 0 : i32
    %c0_i32_0 = arith.constant 0 : i32
    return %arg0, %c0_i32 : i32, i32
  }
  func.func @transform_1(%arg0: i32) -> (i32, i32) {
    %c0_i32 = arith.constant 0 : i32
    %c0_i32_0 = arith.constant 0 : i32
    %c0_i32_1 = arith.constant 0 : i32
    return %c0_i32, %c0_i32_0 : i32, i32
  }
  func.func @transform_2(%arg0: i32) -> (i32, i32) {
    %c0_i32 = arith.constant 0 : i32
    %c0_i32_0 = arith.constant 0 : i32
    %c0_i32_1 = arith.constant 0 : i32
    return %c0_i32, %c0_i32_0 : i32, i32
  }
  func.func @transform_3(%arg0: i32) -> (i32, i32) {
    %c0_i32 = arith.constant 0 : i32
    %c0_i32_0 = arith.constant 0 : i32
    %c0_i32_1 = arith.constant 0 : i32
    return %c0_i32, %c0_i32_0 : i32, i32
  }
  func.func @transform_4(%arg0: i32) -> (i32, i32) {
    %c0_i32 = arith.constant 0 : i32
    %c0_i32_0 = arith.constant 0 : i32
    %c0_i32_1 = arith.constant 0 : i32
    return %c0_i32, %c0_i32_0 : i32, i32
  }
  func.func @transform_5(%arg0: i32) -> (i32, i32) {
    %c0_i32 = arith.constant 0 : i32
    %c0_i32_0 = arith.constant 0 : i32
    return %arg0, %c0_i32 : i32, i32
  }
}

</mosaic_0001>

<llo_original>
// kernel: tpu_custom_call.1
$region0: #{tpu_custom_call.1}
  #allocation0 [shape = 'u32[]', space=smem, size = 0x4, offset = 0x4, fixed_abs, tag = 'smem constant byte address 0x4 - core index']
  #allocation1 [shape = 'u32[144,128]{1,0:T(1,128)}', space=vmem, size = 0x12000, scoped, tag = 'internal scratch']
  %s0 = inlined_call_operand.vmem [shape: s32[16,2], index: 0, kind: input, shape index: {}]
  %s1 = inlined_call_operand.hbm [shape: f32[64,128], index: 1, kind: input, shape index: {}]
  %s2 = inlined_call_operand.vmem [shape: f32[16,128], index: 2, kind: input, shape index: {}]
  %s3 = inlined_call_operand.vmem [shape: f32[2,128], index: 3, kind: input, shape index: {}]
  %s4 = inlined_call_operand.vmem [shape: f32[2,128], index: 4, kind: input, shape index: {}]
  %s5 = inlined_call_operand.hbm [shape: f32[16,128], index: 5, kind: output, shape index: {}]
  %s6 = sld [smem:[#allocation0]]
  $region34: #{tpu_custom_call.1} parent=0
    _
  %s8 = ssub.s32 1, %s6
  %s9 = scalar_select 0, %s8, %s6
  $region1: #{tpu_custom_call.1} parent=0
    #allocation2 [shape = 'u8[32768]{0}', space=vmem, size = 0x8000, scoped, tag = 'input window, operand 1, single buffered']
    #allocation3 [shape = 's32[1]{0}', space=sflag, size = 0x4, scoped, tag = 'scoped memory for tpu_custom_call.1']
    #allocation4 [shape = 's32[1]{0}', space=sflag, size = 0x4, scoped, tag = 'scoped memory for tpu_custom_call.1']
    #allocation5 [shape = 'u8[8192]{0}', space=vmem, size = 0x2000, scoped, tag = 'output window, operand 0, single buffered']
    %10 = vsyncpa [#allocation3], 0
    %11 = vsyncpa [#allocation4], 0
    // Predicated region
    $region2: #{tpu_custom_call.1} parent=1 // pred_check
      _
    $region3: #{tpu_custom_call.1} parent=1 // pred_check_branch
      %13 = sbr.rel (0) target = $region5
    $region4: #{tpu_custom_call.1} parent=1 // pred_region
      _
    $region5: #{tpu_custom_call.1} parent=1 // pred_fallthru
      _
    // Predicated region
    $region6: #{tpu_custom_call.1} parent=1 // pred_check
      _
    $region7: #{tpu_custom_call.1} parent=1 // pred_check_branch
      %15 = sbr.rel (0) target = $region9
    $region8: #{tpu_custom_call.1} parent=1 // pred_region
      %s17 = ssub.s32 1024, 1024
      %18 = vsyncadd [#allocation3], %s17
      %s19 = sshll.u32 [#allocation2], 4
      %s20 = int_to_ptr.vmem [resolvable:$true] %s19
      %25 = dma.hbm_to_vmem [thread:$0]  %s1, 1024, %s20, [#allocation3], 128, 128, 8
    $region9: #{tpu_custom_call.1} parent=1 // pred_fallthru
      _
    // Predicated region
    $region10: #{tpu_custom_call.1} parent=1 // pred_check
      _
    $region11: #{tpu_custom_call.1} parent=1 // pred_check_branch
      %27 = sbr.rel (0) target = $region13
    $region12: #{tpu_custom_call.1} parent=1 // pred_region
      _
    $region13: #{tpu_custom_call.1} parent=1 // pred_fallthru
      _
    // Predicated region
    $region14: #{tpu_custom_call.1} parent=1 // pred_check
      _
    $region15: #{tpu_custom_call.1} parent=1 // pred_check_branch
      %29 = sbr.rel (0) target = $region17
    $region16: #{tpu_custom_call.1} parent=1 // pred_region
      _
    $region17: #{tpu_custom_call.1} parent=1 // pred_fallthru
      _
    // Predicated region
    $region18: #{tpu_custom_call.1} parent=1 // pred_check
      _
    $region19: #{tpu_custom_call.1} parent=1 // pred_check_branch
      %31 = sbr.rel (0) target = $region21
    $region20: #{tpu_custom_call.1} parent=1 // pred_region
      _
    $region21: #{tpu_custom_call.1} parent=1 // pred_fallthru
      _
    // Predicated region
    $region22: #{tpu_custom_call.1} parent=1 // pred_check
      _
    $region23: #{tpu_custom_call.1} parent=1 // pred_check_branch
      %33 = sbr.rel (0) target = $region25
    $region24: #{tpu_custom_call.1} parent=1 // pred_region
      %34 = dma.done [#allocation3], 1024
    $region25: #{tpu_custom_call.1} parent=1 // pred_fallthru
      _
    %v35 = vld [vmem:[%s0] sm:$0xff]
    %v36 = vld [vmem:[%s0 + $0x8] sm:$0xff]
    %v37 = vlaneseq
    %v38 = vand.u32 %v37, 127
    %39 = vset.pattern.permute.xlu0 0
    %40 = vperm.xlu0 %39, %v35
    %v41 = vpop.permute.xlu0 %40
    %42 = vset.pattern.permute.xlu0 0
    %43 = vperm.xlu0 %42, %v36
    %v44 = vpop.permute.xlu0 %43
    %vm45 = vcmp.eq.s32.totalorder %v38, %v41
    %vm46 = vcmp.eq.s32.totalorder %v38, %v44
    %v47 = vsel %vm45, 1, 0
    %v48 = vsel %vm46, 1, 0
    %v49 = vcvt.s32.f32 %v47
    %v50 = vcvt.s32.f32 %v48
    %v51 = vld [vmem:[#allocation2] sm:$0xff]
    %v52 = vld [vmem:[#allocation2 + $0x8] sm:$0xff]
    %v53 = vld [vmem:[#allocation2 + $0x10] sm:$0xff]
    %v54 = vld [vmem:[#allocation2 + $0x18] sm:$0xff]
    %v55 = vld [vmem:[#allocation2 + $0x20] sm:$0xff]
    %v56 = vld [vmem:[#allocation2 + $0x28] sm:$0xff]
    %v57 = vld [vmem:[#allocation2 + $0x30] sm:$0xff]
    %v58 = vld [vmem:[#allocation2 + $0x38] sm:$0xff]
    %v59 = vld [vmem:[%s2] sm:$0xff]
    %v60 = vld [vmem:[%s2 + $0x8] sm:$0xff]
    %vm61 = vcmask 523264
    %v63 = vsel %vm61, %v49, 0
    %v66 = vsel %vm61, %v50, 0
    %68 = vmatprep.subr.mxu0 0.0
    %69 = vmatpush1.msra.mxu0 0.0
    %70 = vmatprep.subr.mxu0 0.0
    %71 = vmatpush1.msra.mxu0 0.0
    %72 = vmatprep.subr.mxu0 0.0
    %73 = vmatpush1.msra.mxu0 0.0
    %74 = vmatprep.subr.mxu0 0.0
    %75 = vmatpush1.msra.mxu0 0.0
    %76 = vmatprep.subr.mxu0 0.0
    %77 = vmatpush1.msra.mxu0 0.0
    %78 = vmatprep.subr.mxu0 0.0
    %79 = vmatpush1.msra.mxu0 0.0
    %80 = vmatprep.subr.mxu0 0.0
    %81 = vmatpush1.msra.mxu0 0.0
    %82 = vmatprep.subr.mxu0 0.0
    %83 = vmatpush1.msra.mxu0 0.0
    %84 = vmatprep.subr.mxu0 0.0
    %85 = vmatpush1.msra.mxu0 %v58
    %86 = vmatprep.subr.mxu0 0.0
    %87 = vmatpush1.msra.mxu0 %v57
    %88 = vmatprep.subr.mxu0 0.0
    %89 = vmatpush1.msra.mxu0 %v56
    %90 = vmatprep.subr.mxu0 0.0
    %91 = vmatpush1.msra.mxu0 %v55
    %92 = vmatprep.subr.mxu0 0.0
    %93 = vmatpush1.msra.mxu0 %v54
    %94 = vmatprep.subr.mxu0 0.0
    %95 = vmatpush1.msra.mxu0 %v53
    %96 = vmatprep.subr.mxu0 0.0
    %97 = vmatpush1.msra.mxu0 %v52
    %98 = vmatprep.subr.mxu0 0.0
    %99 = vmatpush1.msra.mxu0 %v51
    %100 = vmatprep.subr.mxu0 0.0
    %101 = vmatpush2.msra.mxu0 0.0
    %102 = vmatprep.subr.mxu0 0.0
    %103 = vmatpush2.msra.mxu0 0.0
    %104 = vmatprep.subr.mxu0 0.0
    %105 = vmatpush2.msra.mxu0 0.0
    %106 = vmatprep.subr.mxu0 0.0
    %107 = vmatpush2.msra.mxu0 0.0
    %108 = vmatprep.subr.mxu0 0.0
    %109 = vmatpush2.msra.mxu0 0.0
    %110 = vmatprep.subr.mxu0 0.0
    %111 = vmatpush2.msra.mxu0 0.0
    %112 = vmatprep.subr.mxu0 0.0
    %113 = vmatpush2.msra.mxu0 0.0
    %114 = vmatprep.subr.mxu0 0.0
    %115 = vmatpush2.msra.mxu0 0.0
    %116 = vmatprep.subr.mxu0 0.0
    %117 = vmatpush2.msra.mxu0 0.0
    %118 = vmatprep.subr.mxu0 0.0
    %119 = vmatpush2.msra.mxu0 0.0
    %120 = vmatprep.subr.mxu0 0.0
    %121 = vmatpush2.msra.mxu0 0.0
    %122 = vmatprep.subr.mxu0 0.0
    %123 = vmatpush2.msra.mxu0 0.0
    %124 = vmatprep.subr.mxu0 0.0
    %125 = vmatpush2.msra.mxu0 0.0
    %126 = vmatprep.subr.mxu0 0.0
    %127 = vmatpush2.msra.mxu0 0.0
    %128 = vmatprep.subr.mxu0 0.0
    %129 = vmatpush2.msra.mxu0 0.0
    %130 = vmatprep.subr.mxu0 0.0
    %131 = vmatpush2.msra.mxu0 0.0
    %132 = vmatprep.mubr.f32.mxu0 0.0
    %133 = vmatmul.mubr.f32.gmra.mxu0 %v63
    %v134 = vpop.f32.mrf.mxu0
    %v135 = vadd.f32 %v59, %v134
    %v136 = vpop.f32.mrf.mxu0
    %137 = vmatprep.mubr.f32.mxu0 0.0
    %138 = vmatmul.mubr.f32.gmra.mxu0 %v66
    %v139 = vpop.f32.mrf.mxu0
    %v140 = vadd.f32 %v60, %v139
    %v141 = vpop.f32.mrf.mxu0
    %142 = vdwg.mxu0
    %v143 = vcvt.s32.f32 %v35
    %v144 = vcvt.s32.f32 %v36
    %v145 = vld [vmem:[%s3] sm:$0x1]
    %v146 = vld [vmem:[%s3 + $0x1] sm:$0x1]
    %v147 = vlaneseq
    %v148 = vshrl.u32 %v147, 7
    %v149 = vsub.s32 0, %v148
    %v150 = vrot.slane %v145, %v149
    %v151 = vadd.f32 %v135, %v150
    %v152 = vadd.f32 %v140, %v150
    %v153 = vsub.f32 %v146, %v145
    %155 = vset.pattern.permute.xlu0 1
    %156 = vperm.xlu0 %155, %v143
    %v157 = vpop.permute.xlu0 %156
    %160 = vset.pattern.permute.xlu0 1
    %161 = vperm.xlu0 %160, %v144
    %v162 = vpop.permute.xlu0 %161
    %v164 = vlaneseq
    %v165 = vshrl.u32 %v164, 7
    %v166 = vsub.s32 0, %v165
    %v167 = vrot.slane %v153, %v166
    %v168 = vmul.f32 %v157, %v167
    %v169 = vmul.f32 %v162, %v167
    %v170 = vadd.f32 %v151, %v168
    %v171 = vadd.f32 %v152, %v169
    %172 = vadd.xlane.f32.xlu0 %v170
    %v173 = vpop.xlane.xlu0 %172
    %174 = vadd.xlane.f32.xlu0 %v171
    %v175 = vpop.xlane.xlu0 %174
    %v176 = vmul.f32 %v173, 0.0078125
    %v177 = vmul.f32 %v175, 0.0078125
    %v178 = vsub.f32 %v170, %v176
    %v179 = vsub.f32 %v171, %v177
    %v180 = vmul.f32 %v178, %v178
    %v181 = vmul.f32 %v179, %v179
    %182 = vadd.xlane.f32.xlu0 %v180
    %v183 = vpop.xlane.xlu0 %182
    %184 = vadd.xlane.f32.xlu0 %v181
    %v185 = vpop.xlane.xlu0 %184
    %v186 = vmul.f32 %v183, 0.0078125
    %v187 = vmul.f32 %v185, 0.0078125
    %v188 = vadd.f32 %v186, 1e-09
    %v189 = vadd.f32 %v187, 1e-09
    %v190 = vrsqrt.pop %v188
    %v191 = vrsqrt.pop %v189
    %v192 = vld [vmem:[%s4] sm:$0x1]
    %v193 = vld [vmem:[%s4 + $0x1] sm:$0x1]
    %v194 = vmul.f32 %v178, %v190
    %v195 = vmul.f32 %v179, %v191
    %v196 = vlaneseq
    %v197 = vshrl.u32 %v196, 7
    %v198 = vsub.s32 0, %v197
    %v199 = vrot.slane %v192, %v198
    %v200 = vmul.f32 %v194, %v199
    %v201 = vmul.f32 %v195, %v199
    %v202 = vlaneseq
    %v203 = vshrl.u32 %v202, 7
    %v204 = vsub.s32 0, %v203
    %v205 = vrot.slane %v193, %v204
    %v206 = vadd.f32 %v200, %v205
    %v207 = vadd.f32 %v201, %v205
    %208 = vst [vmem:[#allocation5] sm:$0xff] %v206
    %209 = vst [vmem:[#allocation5 + $0x8] sm:$0xff] %v207
    // Predicated region
    $region26: #{tpu_custom_call.1} parent=1 // pred_check
      _
    $region27: #{tpu_custom_call.1} parent=1 // pred_check_branch
      %211 = sbr.rel (0) target = $region29
    $region28: #{tpu_custom_call.1} parent=1 // pred_region
      %s213 = ssub.s32 256, 256
      %214 = vsyncadd [#allocation4], %s213
      %s215 = sshll.u32 [#allocation5], 4
      %s216 = int_to_ptr.vmem [resolvable:$true] %s215
      %221 = dma.vmem_to_hbm [thread:$0]  %s216, 256, %s5, [#allocation4], 128, 128, 8
    $region29: #{tpu_custom_call.1} parent=1 // pred_fallthru
      _
    // Predicated region
    $region30: #{tpu_custom_call.1} parent=1 // pred_check
      _
    $region31: #{tpu_custom_call.1} parent=1 // pred_check_branch
      %223 = sbr.rel (0) target = $region33
    $region32: #{tpu_custom_call.1} parent=1 // pred_region
      %224 = dma.done [#allocation4], 256
    $region33: #{tpu_custom_call.1} parent=1 // pred_fallthru
      _
    %225 = vsyncpa [#allocation3], 1
    %226 = vsyncpa [#allocation4], 1

// kernel: tpu_custom_call.1
$region0: #{tpu_custom_call.1}
  #allocation0 [shape = 'u32[]', space=smem, size = 0x4, offset = 0x4, fixed_abs, tag = 'smem constant byte address 0x4 - core index']
  #allocation1 [shape = 'u32[144,128]{1,0:T(1,128)}', space=vmem, size = 0x12000, scoped, tag = 'internal scratch']
  %s0 = inlined_call_operand.vmem [shape: s32[16,2], index: 0, kind: input, shape index: {}]
  %s1 = inlined_call_operand.hbm [shape: f32[64,128], index: 1, kind: input, shape index: {}]
  %s2 = inlined_call_operand.vmem [shape: f32[16,128], index: 2, kind: input, shape index: {}]
  %s3 = inlined_call_operand.vmem [shape: f32[2,128], index: 3, kind: input, shape index: {}]
  %s4 = inlined_call_operand.vmem [shape: f32[2,128], index: 4, kind: input, shape index: {}]
  %s5 = inlined_call_operand.hbm [shape: f32[16,128], index: 5, kind: output, shape index: {}]
  %s6 = sld [smem:[#allocation0]]
  $region34: #{tpu_custom_call.1} parent=0
    _
  %s8 = ssub.s32 1, %s6
  %s9 = scalar_select 0, %s8, %s6
  $region1: #{tpu_custom_call.1} parent=0
    #allocation2 [shape = 'u8[32768]{0}', space=vmem, size = 0x8000, scoped, tag = 'input window, operand 1, single buffered']
    #allocation3 [shape = 's32[1]{0}', space=sflag, size = 0x4, scoped, tag = 'scoped memory for tpu_custom_call.1']
    #allocation4 [shape = 's32[1]{0}', space=sflag, size = 0x4, scoped, tag = 'scoped memory for tpu_custom_call.1']
    #allocation5 [shape = 'u8[8192]{0}', space=vmem, size = 0x2000, scoped, tag = 'output window, operand 0, single buffered']
    %10 = vsyncpa [#allocation3], 0
    %11 = vsyncpa [#allocation4], 0
    // Predicated region
    $region2: #{tpu_custom_call.1} parent=1 // pred_check
      _
    $region3: #{tpu_custom_call.1} parent=1 // pred_check_branch
      %13 = sbr.rel (0) target = $region5
    $region4: #{tpu_custom_call.1} parent=1 // pred_region
      _
    $region5: #{tpu_custom_call.1} parent=1 // pred_fallthru
      _
    // Predicated region
    $region6: #{tpu_custom_call.1} parent=1 // pred_check
      _
    $region7: #{tpu_custom_call.1} parent=1 // pred_check_branch
      %15 = sbr.rel (0) target = $region9
    $region8: #{tpu_custom_call.1} parent=1 // pred_region
      %s17 = ssub.s32 1024, 1024
      %18 = vsyncadd [#allocation3], %s17
      %s19 = sshll.u32 [#allocation2], 4
      %s20 = int_to_ptr.vmem [resolvable:$true] %s19
      %25 = dma.hbm_to_vmem [thread:$0]  %s1, 1024, %s20, [#allocation3], 128, 128, 8
    $region9: #{tpu_custom_call.1} parent=1 // pred_fallthru
      _
    // Predicated region
    $region10: #{tpu_custom_call.1} parent=1 // pred_check
      _
    $region11: #{tpu_custom_call.1} parent=1 // pred_check_branch
      %27 = sbr.rel (0) target = $region13
    $region12: #{tpu_custom_call.1} parent=1 // pred_region
      _
    $region13: #{tpu_custom_call.1} parent=1 // pred_fallthru
      _
    // Predicated region
    $region14: #{tpu_custom_call.1} parent=1 // pred_check
      _
    $region15: #{tpu_custom_call.1} parent=1 // pred_check_branch
      %29 = sbr.rel (0) target = $region17
    $region16: #{tpu_custom_call.1} parent=1 // pred_region
      _
    $region17: #{tpu_custom_call.1} parent=1 // pred_fallthru
      _
    // Predicated region
    $region18: #{tpu_custom_call.1} parent=1 // pred_check
      _
    $region19: #{tpu_custom_call.1} parent=1 // pred_check_branch
      %31 = sbr.rel (0) target = $region21
    $region20: #{tpu_custom_call.1} parent=1 // pred_region
      _
    $region21: #{tpu_custom_call.1} parent=1 // pred_fallthru
      _
    // Predicated region
    $region22: #{tpu_custom_call.1} parent=1 // pred_check
      _
    $region23: #{tpu_custom_call.1} parent=1 // pred_check_branch
      %33 = sbr.rel (0) target = $region25
    $region24: #{tpu_custom_call.1} parent=1 // pred_region
      %34 = dma.done [#allocation3], 1024
    $region25: #{tpu_custom_call.1} parent=1 // pred_fallthru
      _
    %v35 = vld [vmem:[%s0] sm:$0xff]
    %v36 = vld [vmem:[%s0 + $0x8] sm:$0xff]
    %v37 = vlaneseq
    %v38 = vand.u32 %v37, 127
    %39 = vset.pattern.permute.xlu0 0
    %40 = vperm.xlu0 %39, %v35
    %v41 = vpop.permute.xlu0 %40
    %42 = vset.pattern.permute.xlu0 0
    %43 = vperm.xlu0 %42, %v36
    %v44 = vpop.permute.xlu0 %43
    %vm45 = vcmp.eq.s32.totalorder %v38, %v41
    %vm46 = vcmp.eq.s32.totalorder %v38, %v44
    %v47 = vsel %vm45, 1, 0
    %v48 = vsel %vm46, 1, 0
    %v49 = vcvt.s32.f32 %v47
    %v50 = vcvt.s32.f32 %v48
    %v51 = vld [vmem:[#allocation2] sm:$0xff]
    %v52 = vld [vmem:[#allocation2 + $0x8] sm:$0xff]
    %v53 = vld [vmem:[#allocation2 + $0x10] sm:$0xff]
    %v54 = vld [vmem:[#allocation2 + $0x18] sm:$0xff]
    %v55 = vld [vmem:[#allocation2 + $0x20] sm:$0xff]
    %v56 = vld [vmem:[#allocation2 + $0x28] sm:$0xff]
    %v57 = vld [vmem:[#allocation2 + $0x30] sm:$0xff]
    %v58 = vld [vmem:[#allocation2 + $0x38] sm:$0xff]
    %v59 = vld [vmem:[%s2] sm:$0xff]
    %v60 = vld [vmem:[%s2 + $0x8] sm:$0xff]
    %vm61 = vcmask 523264
    %v63 = vsel %vm61, %v49, 0
    %v66 = vsel %vm61, %v50, 0
    %68 = vmatprep.subr.mxu0 0.0
    %69 = vmatpush1.msra.mxu0 0.0
    %70 = vmatprep.subr.mxu0 0.0
    %71 = vmatpush1.msra.mxu0 0.0
    %72 = vmatprep.subr.mxu0 0.0
    %73 = vmatpush1.msra.mxu0 0.0
    %74 = vmatprep.subr.mxu0 0.0
    %75 = vmatpush1.msra.mxu0 0.0
    %76 = vmatprep.subr.mxu0 0.0
    %77 = vmatpush1.msra.mxu0 0.0
    %78 = vmatprep.subr.mxu0 0.0
    %79 = vmatpush1.msra.mxu0 0.0
    %80 = vmatprep.subr.mxu0 0.0
    %81 = vmatpush1.msra.mxu0 0.0
    %82 = vmatprep.subr.mxu0 0.0
    %83 = vmatpush1.msra.mxu0 0.0
    %84 = vmatprep.subr.mxu0 0.0
    %85 = vmatpush1.msra.mxu0 %v58
    %86 = vmatprep.subr.mxu0 0.0
    %87 = vmatpush1.msra.mxu0 %v57
    %88 = vmatprep.subr.mxu0 0.0
    %89 = vmatpush1.msra.mxu0 %v56
    %90 = vmatprep.subr.mxu0 0.0
    %91 = vmatpush1.msra.mxu0 %v55
    %92 = vmatprep.subr.mxu0 0.0
    %93 = vmatpush1.msra.mxu0 %v54
    %94 = vmatprep.subr.mxu0 0.0
    %95 = vmatpush1.msra.mxu0 %v53
    %96 = vmatprep.subr.mxu0 0.0
    %97 = vmatpush1.msra.mxu0 %v52
    %98 = vmatprep.subr.mxu0 0.0
    %99 = vmatpush1.msra.mxu0 %v51
    %100 = vmatprep.subr.mxu0 0.0
    %101 = vmatpush2.msra.mxu0 0.0
    %102 = vmatprep.subr.mxu0 0.0
    %103 = vmatpush2.msra.mxu0 0.0
    %104 = vmatprep.subr.mxu0 0.0
    %105 = vmatpush2.msra.mxu0 0.0
    %106 = vmatprep.subr.mxu0 0.0
    %107 = vmatpush2.msra.mxu0 0.0
    %108 = vmatprep.subr.mxu0 0.0
    %109 = vmatpush2.msra.mxu0 0.0
    %110 = vmatprep.subr.mxu0 0.0
    %111 = vmatpush2.msra.mxu0 0.0
    %112 = vmatprep.subr.mxu0 0.0
    %113 = vmatpush2.msra.mxu0 0.0
    %114 = vmatprep.subr.mxu0 0.0
    %115 = vmatpush2.msra.mxu0 0.0
    %116 = vmatprep.subr.mxu0 0.0
    %117 = vmatpush2.msra.mxu0 0.0
    %118 = vmatprep.subr.mxu0 0.0
    %119 = vmatpush2.msra.mxu0 0.0
    %120 = vmatprep.subr.mxu0 0.0
    %121 = vmatpush2.msra.mxu0 0.0
    %122 = vmatprep.subr.mxu0 0.0
    %123 = vmatpush2.msra.mxu0 0.0
    %124 = vmatprep.subr.mxu0 0.0
    %125 = vmatpush2.msra.mxu0 0.0
    %126 = vmatprep.subr.mxu0 0.0
    %127 = vmatpush2.msra.mxu0 0.0
    %128 = vmatprep.subr.mxu0 0.0
    %129 = vmatpush2.msra.mxu0 0.0
    %130 = vmatprep.subr.mxu0 0.0
    %131 = vmatpush2.msra.mxu0 0.0
    %132 = vmatprep.mubr.f32.mxu0 0.0
    %133 = vmatmul.mubr.f32.gmra.mxu0 %v63
    %v134 = vpop.f32.mrf.mxu0
    %v135 = vadd.f32 %v59, %v134
    %v136 = vpop.f32.mrf.mxu0
    %137 = vmatprep.mubr.f32.mxu0 0.0
    %138 = vmatmul.mubr.f32.gmra.mxu0 %v66
    %v139 = vpop.f32.mrf.mxu0
    %v140 = vadd.f32 %v60, %v139
    %v141 = vpop.f32.mrf.mxu0
    %142 = vdwg.mxu0
    %v143 = vcvt.s32.f32 %v35
    %v144 = vcvt.s32.f32 %v36
    %v145 = vld [vmem:[%s3] sm:$0x1]
    %v146 = vld [vmem:[%s3 + $0x1] sm:$0x1]
    %v147 = vlaneseq
    %v148 = vshrl.u32 %v147, 7
    %v149 = vsub.s32 0, %v148
    %v150 = vrot.slane %v145, %v149
    %v151 = vadd.f32 %v135, %v150
    %v152 = vadd.f32 %v140, %v150
    %v153 = vsub.f32 %v146, %v145
    %155 = vset.pattern.permute.xlu0 1
    %156 = vperm.xlu0 %155, %v143
    %v157 = vpop.permute.xlu0 %156
    %160 = vset.pattern.permute.xlu0 1
    %161 = vperm.xlu0 %160, %v144
    %v162 = vpop.permute.xlu0 %161
    %v164 = vlaneseq
    %v165 = vshrl.u32 %v164, 7
    %v166 = vsub.s32 0, %v165
    %v167 = vrot.slane %v153, %v166
    %v168 = vmul.f32 %v157, %v167
    %v169 = vmul.f32 %v162, %v167
    %v170 = vadd.f32 %v151, %v168
    %v171 = vadd.f32 %v152, %v169
    %172 = vadd.xlane.f32.xlu0 %v170
    %v173 = vpop.xlane.xlu0 %172
    %174 = vadd.xlane.f32.xlu0 %v171
    %v175 = vpop.xlane.xlu0 %174
    %v176 = vmul.f32 %v173, 0.0078125
    %v177 = vmul.f32 %v175, 0.0078125
    %v178 = vsub.f32 %v170, %v176
    %v179 = vsub.f32 %v171, %v177
    %v180 = vmul.f32 %v178, %v178
    %v181 = vmul.f32 %v179, %v179
    %182 = vadd.xlane.f32.xlu0 %v180
    %v183 = vpop.xlane.xlu0 %182
    %184 = vadd.xlane.f32.xlu0 %v181
    %v185 = vpop.xlane.xlu0 %184
    %v186 = vmul.f32 %v183, 0.0078125
    %v187 = vmul.f32 %v185, 0.0078125
    %v188 = vadd.f32 %v186, 1e-09
    %v189 = vadd.f32 %v187, 1e-09
    %v190 = vrsqrt.pop %v188
    %v191 = vrsqrt.pop %v189
    %v192 = vld [vmem:[%s4] sm:$0x1]
    %v193 = vld [vmem:[%s4 + $0x1] sm:$0x1]
    %v194 = vmul.f32 %v178, %v190
    %v195 = vmul.f32 %v179, %v191
    %v196 = vlaneseq
    %v197 = vshrl.u32 %v196, 7
    %v198 = vsub.s32 0, %v197
    %v199 = vrot.slane %v192, %v198
    %v200 = vmul.f32 %v194, %v199
    %v201 = vmul.f32 %v195, %v199
    %v202 = vlaneseq
    %v203 = vshrl.u32 %v202, 7
    %v204 = vsub.s32 0, %v203
    %v205 = vrot.slane %v193, %v204
    %v206 = vadd.f32 %v200, %v205
    %v207 = vadd.f32 %v201, %v205
    %208 = vst [vmem:[#allocation5] sm:$0xff] %v206
    %209 = vst [vmem:[#allocation5 + $0x8] sm:$0xff] %v207
    // Predicated region
    $region26: #{tpu_custom_call.1} parent=1 // pred_check
      _
    $region27: #{tpu_custom_call.1} parent=1 // pred_check_branch
      %211 = sbr.rel (0) target = $region29
    $region28: #{tpu_custom_call.1} parent=1 // pred_region
      %s213 = ssub.s32 256, 256
      %214 = vsyncadd [#allocation4], %s213
      %s215 = sshll.u32 [#allocation5], 4
      %s216 = int_to_ptr.vmem [resolvable:$true] %s215
      %221 = dma.vmem_to_hbm [thread:$0]  %s216, 256, %s5, [#allocation4], 128, 128, 8
    $region29: #{tpu_custom_call.1} parent=1 // pred_fallthru
      _
    // Predicated region
    $region30: #{tpu_custom_call.1} parent=1 // pred_check
      _
    $region31: #{tpu_custom_call.1} parent=1 // pred_check_branch
      %223 = sbr.rel (0) target = $region33
    $region32: #{tpu_custom_call.1} parent=1 // pred_region
      %224 = dma.done [#allocation4], 256
    $region33: #{tpu_custom_call.1} parent=1 // pred_fallthru
      _
    %225 = vsyncpa [#allocation3], 1
    %226 = vsyncpa [#allocation4], 1

</llo_original>
